<compile_context>
chip_gen: v7x
topology: tpu7x:2x2x1
jax: 0.10.0
libtpu: 0.0.40
codegen_flags: <defaults>
</compile_context>

<pallas_src>
import functools
import math

import numpy as np
import jax
import jax.numpy as jnp
from jax.experimental import pallas as pl
from jax.experimental.pallas import tpu as pltpu


def _pe_table(seq_len, dim_emb):
    """Sinusoidal PE table matching the PyTorch double loop exactly.

    pe[pos, j] = sin(pos / 10000 ** (2*j / dim_emb))  for even j
               = cos(pos / 10000 ** (2*j / dim_emb))  for odd  j
    (Note: the reference module uses column index j itself in the exponent,
    not the pair index floor(j/2) -- we reproduce that exactly.)
    """
    pos = np.arange(seq_len, dtype=np.float64)[:, None]
    j = np.arange(dim_emb, dtype=np.float64)[None, :]
    angle = pos / np.power(10000.0, 2.0 * j / float(dim_emb))
    pe = np.where((np.arange(dim_emb) % 2) == 0, np.sin(angle), np.cos(angle))
    return pe.astype(np.float32)


def _pos_embed_kernel(x_ref, pe_ref, o_ref, *, scale):
    # x_ref: (B_TILE, S*D), pe_ref: (1, S*D) resident in VMEM, lane-dense.
    y = x_ref[...].astype(jnp.float32) * scale + pe_ref[...]
    o_ref[...] = y.astype(o_ref.dtype)


def _pos_embed_dropout_kernel(x_ref, pe_ref, m_ref, o_ref, *, scale):
    # m_ref holds the inverted-dropout keep mask, already scaled by 1/(1-p).
    y = x_ref[...].astype(jnp.float32) * scale + pe_ref[...]
    o_ref[...] = (y * m_ref[...]).astype(o_ref.dtype)


def pos_embedding(x, *, dim_emb=None, timestep=30, p_drop=0.4,
                  training=False, rng_key=None):
    """Pallas implementation of Pos_embedding.forward.

    x: (B, S, D) with S <= timestep and D == dim_emb.
    training=False corresponds to nn.Dropout in eval mode (identity).
    """
    B, S, D = x.shape
    if dim_emb is None:
        dim_emb = D
    assert D == dim_emb, "last dim of x must equal dim_emb"
    assert S <= timestep, "sequence length must not exceed timestep"

    SD = S * D
    x2 = x.reshape(B, SD)                              # lane-dense last dim
    pe = jnp.asarray(_pe_table(S, D).reshape(1, SD))   # compile-time constant
    scale = math.sqrt(float(dim_emb))

    # Batch-row tiling: keep each operand tile <= ~2 MiB so double-buffered
    # in/out(/mask) fits every generation's scoped-VMEM default (16 MiB on
    # v5e) without raising vmem_limit_bytes aggressively.
    row_bytes = SD * 4
    target = max(1, (2 << 20) // row_bytes)
    if target >= B:
        b_tile = B                                     # full dim -> always legal
    else:
        b_tile = min(B, max(8, (target // 8) * 8))     # sublane-aligned tile
    grid = (pl.cdiv(B, b_tile),)

    x_spec = pl.BlockSpec((b_tile, SD), lambda b: (b, 0))
    pe_spec = pl.BlockSpec((1, SD), lambda b: (0, 0))  # same block every step
    out_spec = pl.BlockSpec((b_tile, SD), lambda b: (b, 0))

    io_bytes = 2 * x2.size * x2.dtype.itemsize + pe.size * 4

    if training and p_drop > 0.0:
        if rng_key is None:
            rng_key = jax.random.PRNGKey(0)
        keep_prob = 1.0 - p_drop
        # TODO(synk): dropout randoms are generated with jax.random in the
        # wrapper (not the on-chip pltpu PRNG) so the kernel also runs under
        # the CPU interpreter; inverted-dropout semantics are identical.
        mask = (jax.random.bernoulli(rng_key, keep_prob, (B, SD))
                .astype(jnp.float32) * (1.0 / keep_prob))
        kernel = functools.partial(_pos_embed_dropout_kernel, scale=scale)
        mask_spec = pl.BlockSpec((b_tile, SD), lambda b: (b, 0))
        in_specs = [x_spec, pe_spec, mask_spec]
        args = (x2, pe, mask)
        flops = 3 * B * SD
        bytes_accessed = io_bytes + mask.size * 4
    else:
        kernel = functools.partial(_pos_embed_kernel, scale=scale)
        in_specs = [x_spec, pe_spec]
        args = (x2, pe)
        flops = 2 * B * SD
        bytes_accessed = io_bytes

    out = pl.pallas_call(
        kernel,
        out_shape=jax.ShapeDtypeStruct((B, SD), x.dtype),
        grid=grid,
        in_specs=in_specs,
        out_specs=out_spec,
        compiler_params=pltpu.CompilerParams(
            dimension_semantics=("parallel",),
            vmem_limit_bytes=32 * 1024 * 1024),
        cost_estimate=pl.CostEstimate(
            flops=flops, transcendentals=0, bytes_accessed=int(bytes_accessed)),
    )(*args)
    return out.reshape(B, S, D)


if __name__ == "__main__":
    key = jax.random.PRNGKey(0)
    B, S, D = 2, 8, 32              # batch=2, seq=8 (<= timestep=30), dim_emb=32
    x = jax.random.normal(key, (B, S, D), dtype=jnp.float32)

    # Eval-mode forward (dropout is identity), matching module semantics.
    y = pos_embedding(x, dim_emb=D, timestep=30, p_drop=0.4, training=False)
    jax.block_until_ready(y)

    # Pure-JAX/numpy reference of the deterministic part.
    pe_ref = _pe_table(S, D)
    ref = x * math.sqrt(float(D)) + pe_ref[None]
    assert jnp.allclose(y, ref, atol=1e-4, rtol=1e-4), "mismatch vs reference"

    # Training-mode path (inverted dropout): every element is either 0 or
    # ref / keep_prob.
    y_tr = pos_embedding(x, dim_emb=D, timestep=30, p_drop=0.4,
                         training=True, rng_key=jax.random.PRNGKey(123))
    jax.block_until_ready(y_tr)
    keep_scale = 1.0 / 0.6
    ok = jnp.all((jnp.abs(y_tr) <= 1e-6) |
                 (jnp.abs(y_tr - ref * keep_scale)
                  <= 1e-3 * (1.0 + jnp.abs(ref))))
    assert bool(ok), "dropout output is not {0, ref/keep_prob}"

    print("KERNEL_OK")
</pallas_src>

<mosaic_0001>
module attributes {stable_mosaic.version = 11 : i64} {
  func.func @_pos_embed_kernel(%arg0: i32, %arg1: memref<2x256xf32, #tpu.memory_space<vmem>>, %arg2: memref<1x256xf32, #tpu.memory_space<vmem>>, %arg3: memref<2x256xf32, #tpu.memory_space<vmem>>) attributes {dimension_semantics = [#tpu.dimension_semantics<parallel>], iteration_bounds = array<i64: 1>, scalar_prefetch = 0 : i64, scratch_operands = 0 : i64, tpu.core_type = #tpu.core_type<tc>, window_params = [{transform_indices = @transform_0, window_bounds = array<i64: 2, 256>}, {pipeline_mode = #tpu.pipeline_mode<synchronous>, transform_indices = @transform_1, window_bounds = array<i64: 1, 256>}, {transform_indices = @transform_2, window_bounds = array<i64: 2, 256>}]} {
    %c0 = arith.constant 0 : index
    %c0_0 = arith.constant 0 : index
    %0 = vector.load %arg1[%c0, %c0_0] : memref<2x256xf32, #tpu.memory_space<vmem>>, vector<2x256xf32>
    %cst = arith.constant 5.65685415 : f32
    %1 = vector.broadcast %cst : f32 to vector<2x256xf32>
    %2 = arith.mulf %0, %1 : vector<2x256xf32>
    %c0_1 = arith.constant 0 : index
    %c0_2 = arith.constant 0 : index
    %3 = vector.load %arg2[%c0_1, %c0_2] : memref<1x256xf32, #tpu.memory_space<vmem>>, vector<1x256xf32>
    %4 = vector.broadcast %3 : vector<1x256xf32> to vector<2x256xf32>
    %5 = arith.addf %2, %4 : vector<2x256xf32>
    %c0_3 = arith.constant 0 : index
    %c0_4 = arith.constant 0 : index
    %6 = vector.load %arg3[%c0_3, %c0_4] : memref<2x256xf32, #tpu.memory_space<vmem>>, vector<2x256xf32>
    tpu.vector_store %arg3[%c0_3, %c0_4], %5 {strides = array<i32>} : memref<2x256xf32, #tpu.memory_space<vmem>>, vector<2x256xf32>,
    return
  }
  func.func @transform_0(%arg0: i32) -> (i32, i32) {
    %c0_i32 = arith.constant 0 : i32
    %c0_i32_0 = arith.constant 0 : i32
    return %arg0, %c0_i32 : i32, i32
  }
  func.func @transform_1(%arg0: i32) -> (i32, i32) {
    %c0_i32 = arith.constant 0 : i32
    %c0_i32_0 = arith.constant 0 : i32
    %c0_i32_1 = arith.constant 0 : i32
    return %c0_i32, %c0_i32_0 : i32, i32
  }
  func.func @transform_2(%arg0: i32) -> (i32, i32) {
    %c0_i32 = arith.constant 0 : i32
    %c0_i32_0 = arith.constant 0 : i32
    return %arg0, %c0_i32 : i32, i32
  }
}

</mosaic_0001>

<llo_original>
// kernel: tpu_custom_call.1
$region0: #{tpu_custom_call.1}
  #allocation0 [shape = 'u32[]', space=smem, size = 0x4, offset = 0x4, fixed_abs, tag = 'smem constant byte address 0x4 - core index']
  #allocation1 [shape = 'u32[144,128]{1,0:T(1,128)}', space=vmem, size = 0x12000, scoped, tag = 'internal scratch']
  %s0 = inlined_call_operand.hbm [shape: f32[2,256], index: 0, kind: input, shape index: {}]
  %s1 = inlined_call_operand.vmem [shape: f32[1,256], index: 1, kind: input, shape index: {}]
  %s2 = inlined_call_operand.hbm [shape: f32[2,256], index: 2, kind: output, shape index: {}]
  %s3 = sld [smem:[#allocation0]]
  $region22: #{tpu_custom_call.1} parent=0
    _
  %s5 = ssub.s32 1, %s3
  %s6 = scalar_select 0, %s5, %s3
  $region1: #{tpu_custom_call.1} parent=0
    #allocation2 [shape = 'u8[2048]{0}', space=vmem, size = 0x800, scoped, tag = 'input window, operand 0, single buffered']
    #allocation3 [shape = 's32[1]{0}', space=sflag, size = 0x4, scoped, tag = 'scoped memory for tpu_custom_call.1']
    #allocation4 [shape = 's32[1]{0}', space=sflag, size = 0x4, scoped, tag = 'scoped memory for tpu_custom_call.1']
    #allocation5 [shape = 'u8[2048]{0}', space=vmem, size = 0x800, scoped, tag = 'output window, operand 0, single buffered']
    %7 = vsyncpa [#allocation3], 0
    %8 = vsyncpa [#allocation4], 0
    // Predicated region
    $region2: #{tpu_custom_call.1} parent=1 // pred_check
      _
    $region3: #{tpu_custom_call.1} parent=1 // pred_check_branch
      %10 = sbr.rel (0) target = $region5
    $region4: #{tpu_custom_call.1} parent=1 // pred_region
      %s12 = ssub.s32 64, 64
      %13 = vsyncadd [#allocation3], %s12
      %s15 = sshll.u32 [#allocation2], 4
      %s16 = int_to_ptr.vmem [resolvable:$true] %s15
      %18 = dma.hbm_to_vmem [thread:$0]  %s0, 64, %s16, [#allocation3]
    $region5: #{tpu_custom_call.1} parent=1 // pred_fallthru
      _
    // Predicated region
    $region6: #{tpu_custom_call.1} parent=1 // pred_check
      _
    $region7: #{tpu_custom_call.1} parent=1 // pred_check_branch
      %20 = sbr.rel (0) target = $region9
    $region8: #{tpu_custom_call.1} parent=1 // pred_region
      _
    $region9: #{tpu_custom_call.1} parent=1 // pred_fallthru
      _
    // Predicated region
    $region10: #{tpu_custom_call.1} parent=1 // pred_check
      _
    $region11: #{tpu_custom_call.1} parent=1 // pred_check_branch
      %22 = sbr.rel (0) target = $region13
    $region12: #{tpu_custom_call.1} parent=1 // pred_region
      %23 = dma.done [#allocation3], 64
    $region13: #{tpu_custom_call.1} parent=1 // pred_fallthru
      _
    %v24 = vld [vmem:[#allocation2] sm:$0xf]
    %v25 = vmul.f32 %v24, 5.656854
    %v26 = vld [vmem:[%s1] sm:$0x3]
    %v28 = vlaneseq
    %v29 = vshrl.u32 %v28, 7
    %v30 = vsub.s32 0, %v29
    %v31 = vrot.slane %v26, %v30
    %v32 = vlaneseq
    %v33 = vshrl.u32 %v32, 7
    %v34 = vsub.s32 1, %v33
    %v35 = vrot.slane %v26, %v34
    %v36 = vcombine.low %v31, %v35
    %v38 = vunpack.c.l.s4 1983009808
    %v39 = vunpack.c.0.s8 %v38
    %v40 = vlaneseq
    %v41 = vshrl.u32 %v40, 7
    %v42 = vsub.s32 %v39, %v41
    %v43 = vrot.slane %v36, %v42
    %v45 = vadd.f32 %v25, %v43
    %46 = vst [vmem:[#allocation5] sm:$0xf] %v45
    // Predicated region
    $region14: #{tpu_custom_call.1} parent=1 // pred_check
      _
    $region15: #{tpu_custom_call.1} parent=1 // pred_check_branch
      %48 = sbr.rel (0) target = $region17
    $region16: #{tpu_custom_call.1} parent=1 // pred_region
      %s50 = ssub.s32 64, 64
      %51 = vsyncadd [#allocation4], %s50
      %s53 = sshll.u32 [#allocation5], 4
      %s54 = int_to_ptr.vmem [resolvable:$true] %s53
      %56 = dma.vmem_to_hbm [thread:$0]  %s54, 64, %s2, [#allocation4]
    $region17: #{tpu_custom_call.1} parent=1 // pred_fallthru
      _
    // Predicated region
    $region18: #{tpu_custom_call.1} parent=1 // pred_check
      _
    $region19: #{tpu_custom_call.1} parent=1 // pred_check_branch
      %58 = sbr.rel (0) target = $region21
    $region20: #{tpu_custom_call.1} parent=1 // pred_region
      %59 = dma.done [#allocation4], 64
    $region21: #{tpu_custom_call.1} parent=1 // pred_fallthru
      _
    %60 = vsyncpa [#allocation3], 1
    %61 = vsyncpa [#allocation4], 1

</llo_original>
